<compile_context>
chip_gen: v7x
topology: tpu7x:2x2x1
jax: 0.10.0
libtpu: 0.0.40
codegen_flags: <defaults>
</compile_context>

<pallas_src>
import math

import jax
import jax.numpy as jnp
from jax.experimental import pallas as pl
from jax.experimental.pallas import tpu as pltpu

MS_DIM = 64      # per-input feature dim (ms and node each)
ENC_DIM = 128    # encoder output dim
GRU_H = 256      # GRU hidden size
LANE = 128


def _round_up(x, m):
    return (x + m - 1) // m * m


def _sigmoid_via_tanh(x):
    # sigmoid(x) == 0.5 * (tanh(0.5 * x) + 1): a single EUP push per element
    # instead of a possible exp + reciprocal pair.
    return 0.5 * (jnp.tanh(0.5 * x) + 1.0)


def actor_kernel(ms_ref, node_ref,
                 w_ms_ref, b_ms_ref, w_node_ref, b_node_ref,
                 w_ih_ref, b_gi_ref, b_hn_ref,
                 w_fc_ms_ref, w_fc_h_ref, b_fc_ref,
                 out_ref):
    # Encoders (bf16 matmul operands, f32 MXU accumulate). Inputs are cast in-kernel
    # so the wrapper never makes a separate HBM pass over ms/node.
    ms = ms_ref[...].astype(jnp.bfloat16)                             # (TB, 64)
    node = node_ref[...].astype(jnp.bfloat16)                         # (TB, 64)
    ms_h = jnp.maximum(
        jnp.dot(ms, w_ms_ref[...], preferred_element_type=jnp.float32)
        + b_ms_ref[...], 0.0)                                         # (TB, 128) f32
    xg = jnp.maximum(
        jnp.dot(node, w_node_ref[...], preferred_element_type=jnp.float32)
        + b_node_ref[...], 0.0)                                       # (TB, 128) f32

    # Single-step GRU with h0 = 0: the recurrent matmul vanishes, hidden biases
    # remain.  b_gi already holds b_ih + b_hh for the r/z gates (folded in wrapper).
    gi = jnp.dot(xg.astype(jnp.bfloat16), w_ih_ref[...],
                 preferred_element_type=jnp.float32) + b_gi_ref[...]  # (TB, 768) f32
    H = GRU_H
    r = _sigmoid_via_tanh(gi[:, :H])
    z = _sigmoid_via_tanh(gi[:, H:2 * H])
    n = jnp.tanh(gi[:, 2 * H:] + r * b_hn_ref[...])
    h = (1.0 - z) * n

    # fc(concat([ms_h, h])) as two matmuls (avoids an in-kernel lane concat);
    # output columns are lane-dense (action_dim padded to 128).
    logits = (jnp.dot(ms_h.astype(jnp.bfloat16), w_fc_ms_ref[...],
                      preferred_element_type=jnp.float32)
              + jnp.dot(h.astype(jnp.bfloat16), w_fc_h_ref[...],
                        preferred_element_type=jnp.float32)
              + b_fc_ref[...])

    # Row-wise softmax in f32; padded columns carry a -1e30 bias so exp underflows
    # to exactly 0 there.  s >= 1 (max logit contributes exp(0)=1) -> approx recip OK.
    m = jnp.max(logits, axis=-1, keepdims=True)
    e = jnp.exp(logits - m)
    s = jnp.sum(e, axis=-1, keepdims=True)
    probs = e * pl.reciprocal(s, approx=True)
    out_ref[...] = probs.astype(out_ref.dtype)


def actor_forward(ms, node, params, action_dim, *, tile_b=1024):
    B = ms.shape[0]
    a_pad = params["b_fc"].shape[1]

    # Tile choice: big enough to amortize the ~0.35 us per-grid-step overhead, but
    # capped at ceil(B/2) (rounded to a sublane multiple) so the parallel grid has
    # at least 2 steps whenever B allows -> both v7x TensorCores get used.
    tb = max(8, min(tile_b, _round_up(pl.cdiv(B, 2), 8)))
    if tb >= B:
        tb = B                      # single full-extent block (always legal), grid=1
    grid = (pl.cdiv(B, tb),)        # ragged last block: OOB rows are masked on store

    def pinned(arr):
        # Whole array, same block every grid step -> stays resident in VMEM.
        return pl.BlockSpec(arr.shape, lambda i: (0,) * arr.ndim)

    weight_args = (params["w_ms"], params["b_ms"],
                   params["w_node"], params["b_node"],
                   params["w_ih"], params["b_gi"], params["b_hn"],
                   params["w_fc_ms"], params["w_fc_h"], params["b_fc"])

    in_specs = [pl.BlockSpec((tb, MS_DIM), lambda i: (i, 0)),
                pl.BlockSpec((tb, MS_DIM), lambda i: (i, 0))]
    in_specs += [pinned(a) for a in weight_args]

    flops = 2 * B * (2 * MS_DIM * ENC_DIM            # two encoder matmuls
                     + ENC_DIM * 3 * GRU_H           # GRU input matmul
                     + (ENC_DIM + GRU_H) * a_pad)    # fc head
    transcendentals = B * (3 * GRU_H + a_pad)        # 2 sigmoid + tanh + exp
    bytes_accessed = int(B * 2 * MS_DIM * 4                           # f32 inputs
                         + sum(int(a.size) * a.dtype.itemsize for a in weight_args)
                         + B * a_pad * 2)                             # bf16 output

    out = pl.pallas_call(
        actor_kernel,
        out_shape=jax.ShapeDtypeStruct((B, a_pad), jnp.bfloat16),
        grid=grid,
        in_specs=in_specs,
        out_specs=pl.BlockSpec((tb, a_pad), lambda i: (i, 0)),
        compiler_params=pltpu.CompilerParams(
            dimension_semantics=("parallel",),          # megacore sharding on v7x
            vmem_limit_bytes=32 * 1024 * 1024),         # safe on v5e/v6e/v7x
        cost_estimate=pl.CostEstimate(flops=int(flops),
                                      transcendentals=int(transcendentals),
                                      bytes_accessed=bytes_accessed),
    )(ms, node, *weight_args)

    return out[:B, :action_dim]


def xavier_uniform(key, fan_in, fan_out):
    bound = math.sqrt(6.0 / (fan_in + fan_out))
    # stored transposed vs PyTorch: (in_features, out_features)
    return jax.random.uniform(key, (fan_in, fan_out), jnp.float32, -bound, bound)


def init_params(key, action_dim):
    ks = jax.random.split(key, 6)
    a_pad = _round_up(action_dim, LANE)

    # Encoders (Linear: xavier_uniform weights, zero biases).
    w_ms = xavier_uniform(ks[0], MS_DIM, ENC_DIM)
    w_node = xavier_uniform(ks[1], MS_DIM, ENC_DIM)
    b_ms = jnp.zeros((1, ENC_DIM), jnp.float32)
    b_node = jnp.zeros((1, ENC_DIM), jnp.float32)

    # GRU (PyTorch default uniform(-1/sqrt(H), 1/sqrt(H)); gate order [r | z | n]).
    k_gru = 1.0 / math.sqrt(GRU_H)
    w_ih = jax.random.uniform(ks[2], (ENC_DIM, 3 * GRU_H), jnp.float32, -k_gru, k_gru)
    b_ih = jax.random.uniform(ks[3], (1, 3 * GRU_H), jnp.float32, -k_gru, k_gru)
    b_hh = jax.random.uniform(ks[4], (1, 3 * GRU_H), jnp.float32, -k_gru, k_gru)
    b_gi = b_ih.at[:, :2 * GRU_H].add(b_hh[:, :2 * GRU_H])   # fold b_hh into r/z
    b_hn = b_hh[:, 2 * GRU_H:]                               # n-gate hidden bias

    # fc head, split along the concat axis and padded to a lane-dense 128 columns.
    w_fc = xavier_uniform(ks[5], ENC_DIM + GRU_H, action_dim)
    w_fc_pad = (jnp.zeros((ENC_DIM + GRU_H, a_pad), jnp.float32)
                .at[:, :action_dim].set(w_fc))
    b_fc = jnp.full((1, a_pad), -1e30, jnp.float32).at[:, :action_dim].set(0.0)

    return {
        "w_ms": w_ms.astype(jnp.bfloat16),
        "b_ms": b_ms,
        "w_node": w_node.astype(jnp.bfloat16),
        "b_node": b_node,
        "w_ih": w_ih.astype(jnp.bfloat16),
        "b_gi": b_gi,
        "b_hn": b_hn,
        "w_fc_ms": w_fc_pad[:ENC_DIM, :].astype(jnp.bfloat16),
        "w_fc_h": w_fc_pad[ENC_DIM:, :].astype(jnp.bfloat16),
        "b_fc": b_fc,
    }


def actor_reference(ms, node, p, action_dim):
    # Pure-JAX reference mirroring the kernel's bf16 matmul casts (f32 softmax).
    f32 = jnp.float32
    ms_h = jax.nn.relu(jnp.dot(ms.astype(jnp.bfloat16), p["w_ms"],
                               preferred_element_type=f32) + p["b_ms"])
    xg = jax.nn.relu(jnp.dot(node.astype(jnp.bfloat16), p["w_node"],
                             preferred_element_type=f32) + p["b_node"])
    gi = jnp.dot(xg.astype(jnp.bfloat16), p["w_ih"],
                 preferred_element_type=f32) + p["b_gi"]
    H = GRU_H
    r = jax.nn.sigmoid(gi[:, :H])
    z = jax.nn.sigmoid(gi[:, H:2 * H])
    n = jnp.tanh(gi[:, 2 * H:] + r * p["b_hn"])
    h = (1.0 - z) * n
    logits = (jnp.dot(ms_h.astype(jnp.bfloat16), p["w_fc_ms"], preferred_element_type=f32)
              + jnp.dot(h.astype(jnp.bfloat16), p["w_fc_h"], preferred_element_type=f32)
              + p["b_fc"])
    return jax.nn.softmax(logits, axis=-1)[:, :action_dim]


if __name__ == "__main__":
    key = jax.random.PRNGKey(0)
    k_params, k_ms, k_node = jax.random.split(key, 3)

    B = 2
    ACTION_DIM = 8
    params = init_params(k_params, ACTION_DIM)
    ms = jax.random.normal(k_ms, (B, MS_DIM), jnp.float32)
    node = jax.random.normal(k_node, (B, MS_DIM), jnp.float32)

    out = actor_forward(ms, node, params, ACTION_DIM)
    out = jax.block_until_ready(out)

    ref = actor_reference(ms, node, params, ACTION_DIM)
    assert out.shape == (B, ACTION_DIM)
    out_f32 = out.astype(jnp.float32)
    err = float(jnp.max(jnp.abs(out_f32 - ref)))
    assert err < 5e-3, err                                   # bf16 output rounding
    assert jnp.allclose(jnp.sum(out_f32, axis=-1), 1.0, atol=2e-2)

    print("KERNEL_OK")
</pallas_src>

<mosaic_0001>
module attributes {stable_mosaic.version = 11 : i64} {
  func.func @actor_kernel(%arg0: i32, %arg1: memref<2x64xf32, #tpu.memory_space<vmem>>, %arg2: memref<2x64xf32, #tpu.memory_space<vmem>>, %arg3: memref<64x128xbf16, #tpu.memory_space<vmem>>, %arg4: memref<1x128xf32, #tpu.memory_space<vmem>>, %arg5: memref<64x128xbf16, #tpu.memory_space<vmem>>, %arg6: memref<1x128xf32, #tpu.memory_space<vmem>>, %arg7: memref<128x768xbf16, #tpu.memory_space<vmem>>, %arg8: memref<1x768xf32, #tpu.memory_space<vmem>>, %arg9: memref<1x256xf32, #tpu.memory_space<vmem>>, %arg10: memref<128x128xbf16, #tpu.memory_space<vmem>>, %arg11: memref<256x128xbf16, #tpu.memory_space<vmem>>, %arg12: memref<1x128xf32, #tpu.memory_space<vmem>>, %arg13: memref<2x128xbf16, #tpu.memory_space<vmem>>) attributes {dimension_semantics = [#tpu.dimension_semantics<parallel>], iteration_bounds = array<i64: 1>, scalar_prefetch = 0 : i64, scratch_operands = 0 : i64, tpu.core_type = #tpu.core_type<tc>, window_params = [{transform_indices = @transform_0, window_bounds = array<i64: 2, 64>}, {transform_indices = @transform_1, window_bounds = array<i64: 2, 64>}, {pipeline_mode = #tpu.pipeline_mode<synchronous>, transform_indices = @transform_2, window_bounds = array<i64: 64, 128>}, {pipeline_mode = #tpu.pipeline_mode<synchronous>, transform_indices = @transform_3, window_bounds = array<i64: 1, 128>}, {pipeline_mode = #tpu.pipeline_mode<synchronous>, transform_indices = @transform_4, window_bounds = array<i64: 64, 128>}, {pipeline_mode = #tpu.pipeline_mode<synchronous>, transform_indices = @transform_5, window_bounds = array<i64: 1, 128>}, {pipeline_mode = #tpu.pipeline_mode<synchronous>, transform_indices = @transform_6, window_bounds = array<i64: 128, 768>}, {pipeline_mode = #tpu.pipeline_mode<synchronous>, transform_indices = @transform_7, window_bounds = array<i64: 1, 768>}, {pipeline_mode = #tpu.pipeline_mode<synchronous>, transform_indices = @transform_8, window_bounds = array<i64: 1, 256>}, {pipeline_mode = #tpu.pipeline_mode<synchronous>, transform_indices = @transform_9, window_bounds = array<i64: 128, 128>}, {pipeline_mode = #tpu.pipeline_mode<synchronous>, transform_indices = @transform_10, window_bounds = array<i64: 256, 128>}, {pipeline_mode = #tpu.pipeline_mode<synchronous>, transform_indices = @transform_11, window_bounds = array<i64: 1, 128>}, {transform_indices = @transform_12, window_bounds = array<i64: 2, 128>}]} {
    %c0 = arith.constant 0 : index
    %c0_0 = arith.constant 0 : index
    %0 = vector.load %arg1[%c0, %c0_0] : memref<2x64xf32, #tpu.memory_space<vmem>>, vector<2x64xf32>
    %1 = arith.truncf %0 : vector<2x64xf32> to vector<2x64xbf16>
    %c0_1 = arith.constant 0 : index
    %c0_2 = arith.constant 0 : index
    %2 = vector.load %arg2[%c0_1, %c0_2] : memref<2x64xf32, #tpu.memory_space<vmem>>, vector<2x64xf32>
    %3 = arith.truncf %2 : vector<2x64xf32> to vector<2x64xbf16>
    %c0_3 = arith.constant 0 : index
    %c0_4 = arith.constant 0 : index
    %4 = vector.load %arg3[%c0_3, %c0_4] : memref<64x128xbf16, #tpu.memory_space<vmem>>, vector<64x128xbf16>
    %cst = arith.constant dense<0.000000e+00> : vector<2x128xf32>
    %5 = tpu.matmul %1, %4, %cst {dimension_numbers = #tpu.dot_dimension_numbers<[1], [0], [0], [1], [0, 0, 1, 1], [], []>} : vector<2x64xbf16>, vector<64x128xbf16>, vector<2x128xf32> -> vector<2x128xf32>
    %c0_5 = arith.constant 0 : index
    %c0_6 = arith.constant 0 : index
    %6 = vector.load %arg4[%c0_5, %c0_6] : memref<1x128xf32, #tpu.memory_space<vmem>>, vector<1x128xf32>
    %7 = vector.broadcast %6 : vector<1x128xf32> to vector<2x128xf32>
    %8 = arith.addf %5, %7 : vector<2x128xf32>
    %cst_7 = arith.constant 0.000000e+00 : f32
    %9 = vector.broadcast %cst_7 : f32 to vector<2x128xf32>
    %10 = arith.maximumf %8, %9 : vector<2x128xf32>
    %c0_8 = arith.constant 0 : index
    %c0_9 = arith.constant 0 : index
    %11 = vector.load %arg5[%c0_8, %c0_9] : memref<64x128xbf16, #tpu.memory_space<vmem>>, vector<64x128xbf16>
    %cst_10 = arith.constant dense<0.000000e+00> : vector<2x128xf32>
    %12 = tpu.matmul %3, %11, %cst_10 {dimension_numbers = #tpu.dot_dimension_numbers<[1], [0], [0], [1], [0, 0, 1, 1], [], []>} : vector<2x64xbf16>, vector<64x128xbf16>, vector<2x128xf32> -> vector<2x128xf32>
    %c0_11 = arith.constant 0 : index
    %c0_12 = arith.constant 0 : index
    %13 = vector.load %arg6[%c0_11, %c0_12] : memref<1x128xf32, #tpu.memory_space<vmem>>, vector<1x128xf32>
    %14 = vector.broadcast %13 : vector<1x128xf32> to vector<2x128xf32>
    %15 = arith.addf %12, %14 : vector<2x128xf32>
    %cst_13 = arith.constant 0.000000e+00 : f32
    %16 = vector.broadcast %cst_13 : f32 to vector<2x128xf32>
    %17 = arith.maximumf %15, %16 : vector<2x128xf32>
    %18 = arith.truncf %17 : vector<2x128xf32> to vector<2x128xbf16>
    %c0_14 = arith.constant 0 : index
    %c0_15 = arith.constant 0 : index
    %19 = vector.load %arg7[%c0_14, %c0_15] : memref<128x768xbf16, #tpu.memory_space<vmem>>, vector<128x768xbf16>
    %cst_16 = arith.constant dense<0.000000e+00> : vector<2x768xf32>
    %20 = tpu.matmul %18, %19, %cst_16 {dimension_numbers = #tpu.dot_dimension_numbers<[1], [0], [0], [1], [0, 0, 1, 1], [], []>} : vector<2x128xbf16>, vector<128x768xbf16>, vector<2x768xf32> -> vector<2x768xf32>
    %c0_17 = arith.constant 0 : index
    %c0_18 = arith.constant 0 : index
    %21 = vector.load %arg8[%c0_17, %c0_18] : memref<1x768xf32, #tpu.memory_space<vmem>>, vector<1x768xf32>
    %22 = vector.broadcast %21 : vector<1x768xf32> to vector<2x768xf32>
    %23 = arith.addf %20, %22 : vector<2x768xf32>
    %24 = vector.extract_strided_slice %23 {offsets = [0, 0], sizes = [2, 256], strides = [1, 1]} : vector<2x768xf32> to vector<2x256xf32>
    %cst_19 = arith.constant 5.000000e-01 : f32
    %25 = vector.broadcast %cst_19 : f32 to vector<2x256xf32>
    %26 = arith.mulf %25, %24 : vector<2x256xf32>
    %27 = math.tanh %26 : vector<2x256xf32>
    %cst_20 = arith.constant 1.000000e+00 : f32
    %28 = vector.broadcast %cst_20 : f32 to vector<2x256xf32>
    %29 = arith.addf %27, %28 : vector<2x256xf32>
    %cst_21 = arith.constant 5.000000e-01 : f32
    %30 = vector.broadcast %cst_21 : f32 to vector<2x256xf32>
    %31 = arith.mulf %30, %29 : vector<2x256xf32>
    %32 = vector.extract_strided_slice %23 {offsets = [0, 256], sizes = [2, 256], strides = [1, 1]} : vector<2x768xf32> to vector<2x256xf32>
    %cst_22 = arith.constant 5.000000e-01 : f32
    %33 = vector.broadcast %cst_22 : f32 to vector<2x256xf32>
    %34 = arith.mulf %33, %32 : vector<2x256xf32>
    %35 = math.tanh %34 : vector<2x256xf32>
    %cst_23 = arith.constant 1.000000e+00 : f32
    %36 = vector.broadcast %cst_23 : f32 to vector<2x256xf32>
    %37 = arith.addf %35, %36 : vector<2x256xf32>
    %cst_24 = arith.constant 5.000000e-01 : f32
    %38 = vector.broadcast %cst_24 : f32 to vector<2x256xf32>
    %39 = arith.mulf %38, %37 : vector<2x256xf32>
    %40 = vector.extract_strided_slice %23 {offsets = [0, 512], sizes = [2, 256], strides = [1, 1]} : vector<2x768xf32> to vector<2x256xf32>
    %c0_25 = arith.constant 0 : index
    %c0_26 = arith.constant 0 : index
    %41 = vector.load %arg9[%c0_25, %c0_26] : memref<1x256xf32, #tpu.memory_space<vmem>>, vector<1x256xf32>
    %42 = vector.broadcast %41 : vector<1x256xf32> to vector<2x256xf32>
    %43 = arith.mulf %31, %42 : vector<2x256xf32>
    %44 = arith.addf %40, %43 : vector<2x256xf32>
    %45 = math.tanh %44 : vector<2x256xf32>
    %cst_27 = arith.constant 1.000000e+00 : f32
    %46 = vector.broadcast %cst_27 : f32 to vector<2x256xf32>
    %47 = arith.subf %46, %39 : vector<2x256xf32>
    %48 = arith.mulf %47, %45 : vector<2x256xf32>
    %49 = arith.truncf %10 : vector<2x128xf32> to vector<2x128xbf16>
    %c0_28 = arith.constant 0 : index
    %c0_29 = arith.constant 0 : index
    %50 = vector.load %arg10[%c0_28, %c0_29] : memref<128x128xbf16, #tpu.memory_space<vmem>>, vector<128x128xbf16>
    %cst_30 = arith.constant dense<0.000000e+00> : vector<2x128xf32>
    %51 = tpu.matmul %49, %50, %cst_30 {dimension_numbers = #tpu.dot_dimension_numbers<[1], [0], [0], [1], [0, 0, 1, 1], [], []>} : vector<2x128xbf16>, vector<128x128xbf16>, vector<2x128xf32> -> vector<2x128xf32>
    %52 = arith.truncf %48 : vector<2x256xf32> to vector<2x256xbf16>
    %c0_31 = arith.constant 0 : index
    %c0_32 = arith.constant 0 : index
    %53 = vector.load %arg11[%c0_31, %c0_32] : memref<256x128xbf16, #tpu.memory_space<vmem>>, vector<256x128xbf16>
    %cst_33 = arith.constant dense<0.000000e+00> : vector<2x128xf32>
    %54 = tpu.matmul %52, %53, %cst_33 {dimension_numbers = #tpu.dot_dimension_numbers<[1], [0], [0], [1], [0, 0, 1, 1], [], []>} : vector<2x256xbf16>, vector<256x128xbf16>, vector<2x128xf32> -> vector<2x128xf32>
    %55 = arith.addf %51, %54 : vector<2x128xf32>
    %c0_34 = arith.constant 0 : index
    %c0_35 = arith.constant 0 : index
    %56 = vector.load %arg12[%c0_34, %c0_35] : memref<1x128xf32, #tpu.memory_space<vmem>>, vector<1x128xf32>
    %57 = vector.broadcast %56 : vector<1x128xf32> to vector<2x128xf32>
    %58 = arith.addf %55, %57 : vector<2x128xf32>
    %cst_36 = arith.constant dense<0xFF800000> : vector<2xf32>
    %59 = vector.multi_reduction <maximumf>, %58, %cst_36 [1] : vector<2x128xf32> to vector<2xf32>
    %60 = vector.shape_cast %59 : vector<2xf32> to vector<2x1xf32>
    %61 = vector.broadcast %60 : vector<2x1xf32> to vector<2x128xf32>
    %62 = arith.subf %58, %61 : vector<2x128xf32>
    %63 = math.exp %62 : vector<2x128xf32>
    %cst_37 = arith.constant dense<0.000000e+00> : vector<2xf32>
    %64 = vector.multi_reduction <add>, %63, %cst_37 [1] : vector<2x128xf32> to vector<2xf32>
    %65 = vector.shape_cast %64 : vector<2xf32> to vector<2x1xf32>
    %66 = tpu.reciprocal %65 {approx = true} : vector<2x1xf32> -> vector<2x1xf32>
    %67 = vector.broadcast %66 : vector<2x1xf32> to vector<2x128xf32>
    %68 = arith.mulf %63, %67 : vector<2x128xf32>
    %69 = arith.truncf %68 : vector<2x128xf32> to vector<2x128xbf16>
    %c0_38 = arith.constant 0 : index
    %c0_39 = arith.constant 0 : index
    %70 = vector.load %arg13[%c0_38, %c0_39] : memref<2x128xbf16, #tpu.memory_space<vmem>>, vector<2x128xbf16>
    tpu.vector_store %arg13[%c0_38, %c0_39], %69 {strides = array<i32>} : memref<2x128xbf16, #tpu.memory_space<vmem>>, vector<2x128xbf16>,
    return
  }
  func.func @transform_0(%arg0: i32) -> (i32, i32) {
    %c0_i32 = arith.constant 0 : i32
    %c0_i32_0 = arith.constant 0 : i32
    return %arg0, %c0_i32 : i32, i32
  }
  func.func @transform_1(%arg0: i32) -> (i32, i32) {
    %c0_i32 = arith.constant 0 : i32
    %c0_i32_0 = arith.constant 0 : i32
    return %arg0, %c0_i32 : i32, i32
  }
  func.func @transform_2(%arg0: i32) -> (i32, i32) {
    %c0_i32 = arith.constant 0 : i32
    %c0_i32_0 = arith.constant 0 : i32
    %c0_i32_1 = arith.constant 0 : i32
    return %c0_i32, %c0_i32_0 : i32, i32
  }
  func.func @transform_3(%arg0: i32) -> (i32, i32) {
    %c0_i32 = arith.constant 0 : i32
    %c0_i32_0 = arith.constant 0 : i32
    %c0_i32_1 = arith.constant 0 : i32
    return %c0_i32, %c0_i32_0 : i32, i32
  }
  func.func @transform_4(%arg0: i32) -> (i32, i32) {
    %c0_i32 = arith.constant 0 : i32
    %c0_i32_0 = arith.constant 0 : i32
    %c0_i32_1 = arith.constant 0 : i32
    return %c0_i32, %c0_i32_0 : i32, i32
  }
  func.func @transform_5(%arg0: i32) -> (i32, i32) {
    %c0_i32 = arith.constant 0 : i32
    %c0_i32_0 = arith.constant 0 : i32
    %c0_i32_1 = arith.constant 0 : i32
    return %c0_i32, %c0_i32_0 : i32, i32
  }
  func.func @transform_6(%arg0: i32) -> (i32, i32) {
    %c0_i32 = arith.constant 0 : i32
    %c0_i32_0 = arith.constant 0 : i32
    %c0_i32_1 = arith.constant 0 : i32
    return %c0_i32, %c0_i32_0 : i32, i32
  }
  func.func @transform_7(%arg0: i32) -> (i32, i32) {
    %c0_i32 = arith.constant 0 : i32
    %c0_i32_0 = arith.constant 0 : i32
    %c0_i32_1 = arith.constant 0 : i32
    return %c0_i32, %c0_i32_0 : i32, i32
  }
  func.func @transform_8(%arg0: i32) -> (i32, i32) {
    %c0_i32 = arith.constant 0 : i32
    %c0_i32_0 = arith.constant 0 : i32
    %c0_i32_1 = arith.constant 0 : i32
    return %c0_i32, %c0_i32_0 : i32, i32
  }
  func.func @transform_9(%arg0: i32) -> (i32, i32) {
    %c0_i32 = arith.constant 0 : i32
    %c0_i32_0 = arith.constant 0 : i32
    %c0_i32_1 = arith.constant 0 : i32
    return %c0_i32, %c0_i32_0 : i32, i32
  }
  func.func @transform_10(%arg0: i32) -> (i32, i32) {
    %c0_i32 = arith.constant 0 : i32
    %c0_i32_0 = arith.constant 0 : i32
    %c0_i32_1 = arith.constant 0 : i32
    return %c0_i32, %c0_i32_0 : i32, i32
  }
  func.func @transform_11(%arg0: i32) -> (i32, i32) {
    %c0_i32 = arith.constant 0 : i32
    %c0_i32_0 = arith.constant 0 : i32
    %c0_i32_1 = arith.constant 0 : i32
    return %c0_i32, %c0_i32_0 : i32, i32
  }
  func.func @transform_12(%arg0: i32) -> (i32, i32) {
    %c0_i32 = arith.constant 0 : i32
    %c0_i32_0 = arith.constant 0 : i32
    return %arg0, %c0_i32 : i32, i32
  }
}

</mosaic_0001>

<llo_original>
// kernel: tpu_custom_call.1
$region0: #{tpu_custom_call.1}
  #allocation0 [shape = 'u32[]', space=smem, size = 0x4, offset = 0x4, fixed_abs, tag = 'smem constant byte address 0x4 - core index']
  #allocation1 [shape = 'u32[144,128]{1,0:T(1,128)}', space=vmem, size = 0x12000, scoped, tag = 'internal scratch']
  %s0 = inlined_call_operand.hbm [shape: f32[2,64], index: 0, kind: input, shape index: {}]
  %s1 = inlined_call_operand.vmem [shape: f32[2,64], index: 1, kind: input, shape index: {}]
  %s2 = inlined_call_operand.hbm [shape: bf16[64,128], index: 2, kind: input, shape index: {}]
  %s3 = inlined_call_operand.vmem [shape: f32[1,128], index: 3, kind: input, shape index: {}]
  %s4 = inlined_call_operand.hbm [shape: bf16[64,128], index: 4, kind: input, shape index: {}]
  %s5 = inlined_call_operand.vmem [shape: f32[1,128], index: 5, kind: input, shape index: {}]
  %s6 = inlined_call_operand.hbm [shape: bf16[128,768], index: 6, kind: input, shape index: {}]
  %s7 = inlined_call_operand.vmem [shape: f32[1,768], index: 7, kind: input, shape index: {}]
  %s8 = inlined_call_operand.vmem [shape: f32[1,256], index: 8, kind: input, shape index: {}]
  %s9 = inlined_call_operand.hbm [shape: bf16[128,128], index: 9, kind: input, shape index: {}]
  %s10 = inlined_call_operand.hbm [shape: bf16[256,128], index: 10, kind: input, shape index: {}]
  %s11 = inlined_call_operand.vmem [shape: f32[1,128], index: 11, kind: input, shape index: {}]
  %s12 = inlined_call_operand.hbm [shape: bf16[2,128], index: 12, kind: output, shape index: {}]
  %s13 = sld [smem:[#allocation0]]
  $region82: #{tpu_custom_call.1} parent=0
    _
  %s15 = ssub.s32 1, %s13
  %s16 = scalar_select 0, %s15, %s13
  $region1: #{tpu_custom_call.1} parent=0
    #allocation2 [shape = 'u8[1024]{0}', space=vmem, size = 0x400, scoped, tag = 'input window, operand 0, single buffered']
    #allocation3 [shape = 's32[1]{0}', space=sflag, size = 0x4, scoped, tag = 'scoped memory for tpu_custom_call.1']
    #allocation4 [shape = 's32[1]{0}', space=sflag, size = 0x4, scoped, tag = 'scoped memory for tpu_custom_call.1']
    #allocation5 [shape = 'u8[16384]{0}', space=vmem, size = 0x4000, scoped, tag = 'input window, operand 2, single buffered']
    #allocation6 [shape = 's32[1]{0}', space=sflag, size = 0x4, scoped, tag = 'scoped memory for tpu_custom_call.1']
    #allocation7 [shape = 'u8[16384]{0}', space=vmem, size = 0x4000, scoped, tag = 'input window, operand 4, single buffered']
    #allocation8 [shape = 'u8[196608]{0}', space=vmem, size = 0x30000, scoped, tag = 'input window, operand 6, single buffered']
    #allocation9 [shape = 's32[1]{0}', space=sflag, size = 0x4, scoped, tag = 'scoped memory for tpu_custom_call.1']
    #allocation10 [shape = 'u8[32768]{0}', space=vmem, size = 0x8000, scoped, tag = 'input window, operand 9, single buffered']
    #allocation11 [shape = 'u8[65536]{0}', space=vmem, size = 0x10000, scoped, tag = 'input window, operand 10, single buffered']
    #allocation12 [shape = 's32[1]{0}', space=sflag, size = 0x4, scoped, tag = 'scoped memory for tpu_custom_call.1']
    #allocation13 [shape = 'u8[512]{0}', space=vmem, size = 0x400, scoped, tag = 'output window, operand 0, single buffered']
    %17 = vsyncpa [#allocation3], 0
    %18 = vsyncpa [#allocation6], 0
    %19 = vsyncpa [#allocation9], 0
    %20 = vsyncpa [#allocation12], 0
    %21 = vsyncpa [#allocation4], 0
    // Predicated region
    $region2: #{tpu_custom_call.1} parent=1 // pred_check
      _
    $region3: #{tpu_custom_call.1} parent=1 // pred_check_branch
      %23 = sbr.rel (0) target = $region5
    $region4: #{tpu_custom_call.1} parent=1 // pred_region
      %s25 = ssub.s32 32, 32
      %26 = vsyncadd [#allocation3], %s25
      %s28 = sshll.u32 [#allocation2], 4
      %s29 = int_to_ptr.vmem [resolvable:$true] %s28
      %31 = dma.hbm_to_vmem [thread:$0]  %s0, 32, %s29, [#allocation3]
    $region5: #{tpu_custom_call.1} parent=1 // pred_fallthru
      _
    // Predicated region
    $region6: #{tpu_custom_call.1} parent=1 // pred_check
      _
    $region7: #{tpu_custom_call.1} parent=1 // pred_check_branch
      %33 = sbr.rel (0) target = $region9
    $region8: #{tpu_custom_call.1} parent=1 // pred_region
      _
    $region9: #{tpu_custom_call.1} parent=1 // pred_fallthru
      _
    // Predicated region
    $region10: #{tpu_custom_call.1} parent=1 // pred_check
      _
    $region11: #{tpu_custom_call.1} parent=1 // pred_check_branch
      %35 = sbr.rel (0) target = $region13
    $region12: #{tpu_custom_call.1} parent=1 // pred_region
      %s37 = ssub.s32 512, 512
      %38 = vsyncadd [#allocation6], %s37
      %s39 = sshll.u32 [#allocation5], 4
      %s40 = int_to_ptr.vmem [resolvable:$true] %s39
      %45 = dma.hbm_to_vmem [thread:$0]  %s2, 512, %s40, [#allocation6], 64, 64, 4
    $region13: #{tpu_custom_call.1} parent=1 // pred_fallthru
      _
    // Predicated region
    $region14: #{tpu_custom_call.1} parent=1 // pred_check
      _
    $region15: #{tpu_custom_call.1} parent=1 // pred_check_branch
      %47 = sbr.rel (0) target = $region17
    $region16: #{tpu_custom_call.1} parent=1 // pred_region
      _
    $region17: #{tpu_custom_call.1} parent=1 // pred_fallthru
      _
    // Predicated region
    $region18: #{tpu_custom_call.1} parent=1 // pred_check
      _
    $region19: #{tpu_custom_call.1} parent=1 // pred_check_branch
      %49 = sbr.rel (0) target = $region21
    $region20: #{tpu_custom_call.1} parent=1 // pred_region
      %s51 = ssub.s32 512, 512
      %52 = vsyncadd [#allocation6], %s51
      %s53 = sshll.u32 [#allocation7], 4
      %s54 = int_to_ptr.vmem [resolvable:$true] %s53
      %59 = dma.hbm_to_vmem [thread:$0]  %s4, 512, %s54, [#allocation6], 64, 64, 4
    $region21: #{tpu_custom_call.1} parent=1 // pred_fallthru
      _
    // Predicated region
    $region22: #{tpu_custom_call.1} parent=1 // pred_check
      _
    $region23: #{tpu_custom_call.1} parent=1 // pred_check_branch
      %61 = sbr.rel (0) target = $region25
    $region24: #{tpu_custom_call.1} parent=1 // pred_region
      _
    $region25: #{tpu_custom_call.1} parent=1 // pred_fallthru
      _
    // Predicated region
    $region26: #{tpu_custom_call.1} parent=1 // pred_check
      _
    $region27: #{tpu_custom_call.1} parent=1 // pred_check_branch
      %63 = sbr.rel (0) target = $region29
    $region28: #{tpu_custom_call.1} parent=1 // pred_region
      %s65 = ssub.s32 6144, 6144
      %66 = vsyncadd [#allocation9], %s65
      %s67 = sshll.u32 [#allocation8], 4
      %s68 = int_to_ptr.vmem [resolvable:$true] %s67
      %73 = dma.hbm_to_vmem [thread:$0]  %s6, 6144, %s68, [#allocation9], 384, 384, 24
    $region29: #{tpu_custom_call.1} parent=1 // pred_fallthru
      _
    // Predicated region
    $region30: #{tpu_custom_call.1} parent=1 // pred_check
      _
    $region31: #{tpu_custom_call.1} parent=1 // pred_check_branch
      %75 = sbr.rel (0) target = $region33
    $region32: #{tpu_custom_call.1} parent=1 // pred_region
      _
    $region33: #{tpu_custom_call.1} parent=1 // pred_fallthru
      _
    // Predicated region
    $region34: #{tpu_custom_call.1} parent=1 // pred_check
      _
    $region35: #{tpu_custom_call.1} parent=1 // pred_check_branch
      %77 = sbr.rel (0) target = $region37
    $region36: #{tpu_custom_call.1} parent=1 // pred_region
      _
    $region37: #{tpu_custom_call.1} parent=1 // pred_fallthru
      _
    // Predicated region
    $region38: #{tpu_custom_call.1} parent=1 // pred_check
      _
    $region39: #{tpu_custom_call.1} parent=1 // pred_check_branch
      %79 = sbr.rel (0) target = $region41
    $region40: #{tpu_custom_call.1} parent=1 // pred_region
      %s81 = ssub.s32 1024, 1024
      %82 = vsyncadd [#allocation9], %s81
      %s83 = sshll.u32 [#allocation10], 4
      %s84 = int_to_ptr.vmem [resolvable:$true] %s83
      %89 = dma.hbm_to_vmem [thread:$0]  %s9, 1024, %s84, [#allocation9], 64, 64, 4
    $region41: #{tpu_custom_call.1} parent=1 // pred_fallthru
      _
    // Predicated region
    $region42: #{tpu_custom_call.1} parent=1 // pred_check
      _
    $region43: #{tpu_custom_call.1} parent=1 // pred_check_branch
      %91 = sbr.rel (0) target = $region45
    $region44: #{tpu_custom_call.1} parent=1 // pred_region
      %s93 = ssub.s32 2048, 2048
      %94 = vsyncadd [#allocation12], %s93
      %s95 = sshll.u32 [#allocation11], 4
      %s96 = int_to_ptr.vmem [resolvable:$true] %s95
      %101 = dma.hbm_to_vmem [thread:$0]  %s10, 2048, %s96, [#allocation12], 64, 64, 4
    $region45: #{tpu_custom_call.1} parent=1 // pred_fallthru
      _
    // Predicated region
    $region46: #{tpu_custom_call.1} parent=1 // pred_check
      _
    $region47: #{tpu_custom_call.1} parent=1 // pred_check_branch
      %103 = sbr.rel (0) target = $region49
    $region48: #{tpu_custom_call.1} parent=1 // pred_region
      _
    $region49: #{tpu_custom_call.1} parent=1 // pred_fallthru
      _
    // Predicated region
    $region50: #{tpu_custom_call.1} parent=1 // pred_check
      _
    $region51: #{tpu_custom_call.1} parent=1 // pred_check_branch
      %105 = sbr.rel (0) target = $region53
    $region52: #{tpu_custom_call.1} parent=1 // pred_region
      %106 = dma.done [#allocation3], 32
    $region53: #{tpu_custom_call.1} parent=1 // pred_fallthru
      _
    // Predicated region
    $region54: #{tpu_custom_call.1} parent=1 // pred_check
      _
    $region55: #{tpu_custom_call.1} parent=1 // pred_check_branch
      %108 = sbr.rel (0) target = $region57
    $region56: #{tpu_custom_call.1} parent=1 // pred_region
      %109 = dma.done [#allocation6], 512
    $region57: #{tpu_custom_call.1} parent=1 // pred_fallthru
      _
    // Predicated region
    $region58: #{tpu_custom_call.1} parent=1 // pred_check
      _
    $region59: #{tpu_custom_call.1} parent=1 // pred_check_branch
      %111 = sbr.rel (0) target = $region61
    $region60: #{tpu_custom_call.1} parent=1 // pred_region
      %112 = dma.done [#allocation6], 512
    $region61: #{tpu_custom_call.1} parent=1 // pred_fallthru
      _
    // Predicated region
    $region62: #{tpu_custom_call.1} parent=1 // pred_check
      _
    $region63: #{tpu_custom_call.1} parent=1 // pred_check_branch
      %114 = sbr.rel (0) target = $region65
    $region64: #{tpu_custom_call.1} parent=1 // pred_region
      %115 = dma.done [#allocation9], 6144
    $region65: #{tpu_custom_call.1} parent=1 // pred_fallthru
      _
    // Predicated region
    $region66: #{tpu_custom_call.1} parent=1 // pred_check
      _
    $region67: #{tpu_custom_call.1} parent=1 // pred_check_branch
      %117 = sbr.rel (0) target = $region69
    $region68: #{tpu_custom_call.1} parent=1 // pred_region
      %118 = dma.done [#allocation9], 1024
    $region69: #{tpu_custom_call.1} parent=1 // pred_fallthru
      _
    // Predicated region
    $region70: #{tpu_custom_call.1} parent=1 // pred_check
      _
    $region71: #{tpu_custom_call.1} parent=1 // pred_check_branch
      %120 = sbr.rel (0) target = $region73
    $region72: #{tpu_custom_call.1} parent=1 // pred_region
      %121 = dma.done [#allocation12], 2048
    $region73: #{tpu_custom_call.1} parent=1 // pred_fallthru
      _
    %v123 = vld [vmem:[#allocation2] sm:$0x3]
    %v124 = vpack.c.bf16 %v123, %v123
    %v125 = vld [vmem:[%s1] sm:$0x3]
    %v126 = vpack.c.bf16 %v125, %v125
    %v127 = vld [vmem:[#allocation5] sm:$0xf]
    %v128 = vld [vmem:[#allocation5 + $0x4] sm:$0xf]
    %v129 = vld [vmem:[#allocation5 + $0x8] sm:$0xf]
    %v130 = vld [vmem:[#allocation5 + $0xc] sm:$0xf]
    %v131 = vld [vmem:[#allocation5 + $0x10] sm:$0xf]
    %v132 = vld [vmem:[#allocation5 + $0x14] sm:$0xf]
    %v133 = vld [vmem:[#allocation5 + $0x18] sm:$0xf]
    %v134 = vld [vmem:[#allocation5 + $0x1c] sm:$0xf]
    %v135 = vld [vmem:[%s3] sm:$0x1]
    %v137 = vlaneseq
    %v138 = vshrl.u32 %v137, 7
    %v139 = vsub.s32 0, %v138
    %v140 = vrot.slane %v135, %v139
    %v150 = vunpack.c.l.b16 %v127
    %v151 = vunpack.c.l.b16 %v128
    %v152 = vunpack.c.l.b16 %v129
    %v153 = vunpack.c.l.b16 %v130
    %v154 = vunpack.c.l.b16 %v131
    %v155 = vunpack.c.l.b16 %v132
    %v156 = vunpack.c.l.b16 %v133
    %v157 = vunpack.c.l.b16 %v134
    %v158 = vpack.c.b16 %v151, %v150
    %v159 = vpack.c.b16 %v153, %v152
    %v160 = vpack.c.b16 %v155, %v154
    %v161 = vpack.c.b16 %v157, %v156
    %vm166 = vcmask 523264
    %v168 = vsel %vm166, %v124, 0
    %170 = vmatprep.subr.bf16.mxu0 0
    %171 = vmatpush1.bf16.msra.mxu0 %v158
    %172 = vmatprep.subr.bf16.mxu0 0
    %173 = vmatpush1.bf16.msra.mxu0 %v159
    %174 = vmatprep.subr.bf16.mxu0 0
    %175 = vmatpush1.bf16.msra.mxu0 %v160
    %176 = vmatprep.subr.bf16.mxu0 0
    %177 = vmatpush1.bf16.msra.mxu0 %v161
    %178 = vmatprep.subr.bf16.mxu0 0
    %179 = vmatpush1.bf16.msra.mxu0 0
    %180 = vmatprep.subr.bf16.mxu0 0
    %181 = vmatpush1.bf16.msra.mxu0 0
    %182 = vmatprep.subr.bf16.mxu0 0
    %183 = vmatpush1.bf16.msra.mxu0 0
    %184 = vmatprep.subr.bf16.mxu0 0
    %185 = vmatpush1.bf16.msra.mxu0 0
    %186 = vmatprep.subr.bf16.mxu0 0
    %187 = vmatpush1.bf16.msra.mxu0 0
    %188 = vmatprep.subr.bf16.mxu0 0
    %189 = vmatpush1.bf16.msra.mxu0 0
    %190 = vmatprep.subr.bf16.mxu0 0
    %191 = vmatpush1.bf16.msra.mxu0 0
    %192 = vmatprep.subr.bf16.mxu0 0
    %193 = vmatpush1.bf16.msra.mxu0 0
    %194 = vmatprep.subr.bf16.mxu0 0
    %195 = vmatpush1.bf16.msra.mxu0 0
    %196 = vmatprep.subr.bf16.mxu0 0
    %197 = vmatpush1.bf16.msra.mxu0 0
    %198 = vmatprep.subr.bf16.mxu0 0
    %199 = vmatpush1.bf16.msra.mxu0 0
    %200 = vmatprep.subr.bf16.mxu0 0
    %201 = vmatpush1.bf16.msra.mxu0 0
    %202 = vmatprep.mubr.bf16.mxu0 0
    %203 = vmatmul.mubr.bf16.gmra.mrb[0].mxu0 %v168
    %v204 = vpop.f32.mrb[0].mxu0
    %v205 = vadd.f32 %v140, %v204
    %v206 = vpop.f32.mrb[0].mxu0
    %v207 = vpop.f32.mrb[0].mxu0
    %v208 = vpop.f32.mrb[0].mxu0
    %209 = vdwg.mxu0
    %v210 = vmax.f32 %v205, 0.0
    %v211 = vld [vmem:[#allocation7] sm:$0xf]
    %v212 = vld [vmem:[#allocation7 + $0x4] sm:$0xf]
    %v213 = vld [vmem:[#allocation7 + $0x8] sm:$0xf]
    %v214 = vld [vmem:[#allocation7 + $0xc] sm:$0xf]
    %v215 = vld [vmem:[#allocation7 + $0x10] sm:$0xf]
    %v216 = vld [vmem:[#allocation7 + $0x14] sm:$0xf]
    %v217 = vld [vmem:[#allocation7 + $0x18] sm:$0xf]
    %v218 = vld [vmem:[#allocation7 + $0x1c] sm:$0xf]
    %v219 = vld [vmem:[%s5] sm:$0x1]
    %v221 = vlaneseq
    %v222 = vshrl.u32 %v221, 7
    %v223 = vsub.s32 0, %v222
    %v224 = vrot.slane %v219, %v223
    %v234 = vunpack.c.l.b16 %v211
    %v235 = vunpack.c.l.b16 %v212
    %v236 = vunpack.c.l.b16 %v213
    %v237 = vunpack.c.l.b16 %v214
    %v238 = vunpack.c.l.b16 %v215
    %v239 = vunpack.c.l.b16 %v216
    %v240 = vunpack.c.l.b16 %v217
    %v241 = vunpack.c.l.b16 %v218
    %v242 = vpack.c.b16 %v235, %v234
    %v243 = vpack.c.b16 %v237, %v236
    %v244 = vpack.c.b16 %v239, %v238
    %v245 = vpack.c.b16 %v241, %v240
    %v251 = vsel %vm166, %v126, 0
    %253 = vmatprep.subr.bf16.mxu0 0
    %254 = vmatpush1.bf16.msra.mxu0 %v242
    %255 = vmatprep.subr.bf16.mxu0 0
    %256 = vmatpush1.bf16.msra.mxu0 %v243
    %257 = vmatprep.subr.bf16.mxu0 0
    %258 = vmatpush1.bf16.msra.mxu0 %v244
    %259 = vmatprep.subr.bf16.mxu0 0
    %260 = vmatpush1.bf16.msra.mxu0 %v245
    %261 = vmatprep.subr.bf16.mxu0 0
    %262 = vmatpush1.bf16.msra.mxu0 0
    %263 = vmatprep.subr.bf16.mxu0 0
    %264 = vmatpush1.bf16.msra.mxu0 0
    %265 = vmatprep.subr.bf16.mxu0 0
    %266 = vmatpush1.bf16.msra.mxu0 0
    %267 = vmatprep.subr.bf16.mxu0 0
    %268 = vmatpush1.bf16.msra.mxu0 0
    %269 = vmatprep.subr.bf16.mxu0 0
    %270 = vmatpush1.bf16.msra.mxu0 0
    %271 = vmatprep.subr.bf16.mxu0 0
    %272 = vmatpush1.bf16.msra.mxu0 0
    %273 = vmatprep.subr.bf16.mxu0 0
    %274 = vmatpush1.bf16.msra.mxu0 0
    %275 = vmatprep.subr.bf16.mxu0 0
    %276 = vmatpush1.bf16.msra.mxu0 0
    %277 = vmatprep.subr.bf16.mxu0 0
    %278 = vmatpush1.bf16.msra.mxu0 0
    %279 = vmatprep.subr.bf16.mxu0 0
    %280 = vmatpush1.bf16.msra.mxu0 0
    %281 = vmatprep.subr.bf16.mxu0 0
    %282 = vmatpush1.bf16.msra.mxu0 0
    %283 = vmatprep.subr.bf16.mxu0 0
    %284 = vmatpush1.bf16.msra.mxu0 0
    %285 = vmatprep.mubr.bf16.mxu0 0
    %286 = vmatmul.mubr.bf16.gmra.mrb[0].mxu0 %v251
    %v287 = vpop.f32.mrb[0].mxu0
    %v288 = vadd.f32 %v224, %v287
    %v289 = vpop.f32.mrb[0].mxu0
    %v290 = vpop.f32.mrb[0].mxu0
    %v291 = vpop.f32.mrb[0].mxu0
    %292 = vdwg.mxu0
    %v293 = vmax.f32 %v288, 0.0
    %v294 = vpack.c.bf16 %v293, %v293
    %v295 = vld [vmem:[#allocation8] sm:$0xff]
    %v296 = vld [vmem:[#allocation8 + $0x8] sm:$0xff]
    %v297 = vld [vmem:[#allocation8 + $0x10] sm:$0xff]
    %v298 = vld [vmem:[#allocation8 + $0x18] sm:$0xff]
    %v299 = vld [vmem:[#allocation8 + $0x20] sm:$0xff]
    %v300 = vld [vmem:[#allocation8 + $0x28] sm:$0xff]
    %v301 = vld [vmem:[#allocation8 + $0x30] sm:$0xff]
    %v302 = vld [vmem:[#allocation8 + $0x38] sm:$0xff]
    %v303 = vld [vmem:[#allocation8 + $0x40] sm:$0xff]
    %v304 = vld [vmem:[#allocation8 + $0x48] sm:$0xff]
    %v305 = vld [vmem:[#allocation8 + $0x50] sm:$0xff]
    %v306 = vld [vmem:[#allocation8 + $0x58] sm:$0xff]
    %v307 = vld [vmem:[#allocation8 + $0x60] sm:$0xff]
    %v308 = vld [vmem:[#allocation8 + $0x68] sm:$0xff]
    %v309 = vld [vmem:[#allocation8 + $0x70] sm:$0xff]
    %v310 = vld [vmem:[#allocation8 + $0x78] sm:$0xff]
    %v311 = vld [vmem:[#allocation8 + $0x80] sm:$0xff]
    %v312 = vld [vmem:[#allocation8 + $0x88] sm:$0xff]
    %v313 = vld [vmem:[#allocation8 + $0x90] sm:$0xff]
    %v314 = vld [vmem:[#allocation8 + $0x98] sm:$0xff]
    %v315 = vld [vmem:[#allocation8 + $0xa0] sm:$0xff]
    %v316 = vld [vmem:[#allocation8 + $0xa8] sm:$0xff]
    %v317 = vld [vmem:[#allocation8 + $0xb0] sm:$0xff]
    %v318 = vld [vmem:[#allocation8 + $0xb8] sm:$0xff]
    %v319 = vld [vmem:[#allocation8 + $0xc0] sm:$0xff]
    %v320 = vld [vmem:[#allocation8 + $0xc8] sm:$0xff]
    %v321 = vld [vmem:[#allocation8 + $0xd0] sm:$0xff]
    %v322 = vld [vmem:[#allocation8 + $0xd8] sm:$0xff]
    %v323 = vld [vmem:[#allocation8 + $0xe0] sm:$0xff]
    %v324 = vld [vmem:[#allocation8 + $0xe8] sm:$0xff]
    %v325 = vld [vmem:[#allocation8 + $0xf0] sm:$0xff]
    %v326 = vld [vmem:[#allocation8 + $0xf8] sm:$0xff]
    %v327 = vld [vmem:[#allocation8 + $0x100] sm:$0xff]
    %v328 = vld [vmem:[#allocation8 + $0x108] sm:$0xff]
    %v329 = vld [vmem:[#allocation8 + $0x110] sm:$0xff]
    %v330 = vld [vmem:[#allocation8 + $0x118] sm:$0xff]
    %v331 = vld [vmem:[#allocation8 + $0x120] sm:$0xff]
    %v332 = vld [vmem:[#allocation8 + $0x128] sm:$0xff]
    %v333 = vld [vmem:[#allocation8 + $0x130] sm:$0xff]
    %v334 = vld [vmem:[#allocation8 + $0x138] sm:$0xff]
    %v335 = vld [vmem:[#allocation8 + $0x140] sm:$0xff]
    %v336 = vld [vmem:[#allocation8 + $0x148] sm:$0xff]
    %v337 = vld [vmem:[#allocation8 + $0x150] sm:$0xff]
    %v338 = vld [vmem:[#allocation8 + $0x158] sm:$0xff]
    %v339 = vld [vmem:[#allocation8 + $0x160] sm:$0xff]
    %v340 = vld [vmem:[#allocation8 + $0x168] sm:$0xff]
    %v341 = vld [vmem:[#allocation8 + $0x170] sm:$0xff]
    %v342 = vld [vmem:[#allocation8 + $0x178] sm:$0xff]
    %v343 = vld [vmem:[%s7] sm:$0x3f]
    %v345 = vlaneseq
    %v346 = vshrl.u32 %v345, 7
    %v347 = vsub.s32 0, %v346
    %v348 = vrot.slane %v343, %v347
    %v349 = vlaneseq
    %v350 = vshrl.u32 %v349, 7
    %v351 = vsub.s32 1, %v350
    %v352 = vrot.slane %v343, %v351
    %v353 = vlaneseq
    %v354 = vshrl.u32 %v353, 7
    %v355 = vsub.s32 2, %v354
    %v356 = vrot.slane %v343, %v355
    %v357 = vlaneseq
    %v358 = vshrl.u32 %v357, 7
    %v359 = vsub.s32 3, %v358
    %v360 = vrot.slane %v343, %v359
    %v361 = vlaneseq
    %v362 = vshrl.u32 %v361, 7
    %v363 = vsub.s32 4, %v362
    %v364 = vrot.slane %v343, %v363
    %v365 = vlaneseq
    %v366 = vshrl.u32 %v365, 7
    %v367 = vsub.s32 5, %v366
    %v368 = vrot.slane %v343, %v367
    %v423 = vunpack.c.l.b16 %v295
    %v424 = vunpack.c.h.b16 %v295
    %v425 = vunpack.c.l.b16 %v296
    %v426 = vunpack.c.h.b16 %v296
    %v427 = vunpack.c.l.b16 %v297
    %v428 = vunpack.c.h.b16 %v297
    %v429 = vunpack.c.l.b16 %v298
    %v430 = vunpack.c.h.b16 %v298
    %v431 = vunpack.c.l.b16 %v299
    %v432 = vunpack.c.h.b16 %v299
    %v433 = vunpack.c.l.b16 %v300
    %v434 = vunpack.c.h.b16 %v300
    %v435 = vunpack.c.l.b16 %v301
    %v436 = vunpack.c.h.b16 %v301
    %v437 = vunpack.c.l.b16 %v302
    %v438 = vunpack.c.h.b16 %v302
    %v439 = vunpack.c.l.b16 %v303
    %v440 = vunpack.c.h.b16 %v303
    %v441 = vunpack.c.l.b16 %v304
    %v442 = vunpack.c.h.b16 %v304
    %v443 = vunpack.c.l.b16 %v305
    %v444 = vunpack.c.h.b16 %v305
    %v445 = vunpack.c.l.b16 %v306
    %v446 = vunpack.c.h.b16 %v306
    %v447 = vunpack.c.l.b16 %v307
    %v448 = vunpack.c.h.b16 %v307
    %v449 = vunpack.c.l.b16 %v308
    %v450 = vunpack.c.h.b16 %v308
    %v451 = vunpack.c.l.b16 %v309
    %v452 = vunpack.c.h.b16 %v309
    %v453 = vunpack.c.l.b16 %v310
    %v454 = vunpack.c.h.b16 %v310
    %v455 = vunpack.c.l.b16 %v311
    %v456 = vunpack.c.h.b16 %v311
    %v457 = vunpack.c.l.b16 %v312
    %v458 = vunpack.c.h.b16 %v312
    %v459 = vunpack.c.l.b16 %v313
    %v460 = vunpack.c.h.b16 %v313
    %v461 = vunpack.c.l.b16 %v314
    %v462 = vunpack.c.h.b16 %v314
    %v463 = vunpack.c.l.b16 %v315
    %v464 = vunpack.c.h.b16 %v315
    %v465 = vunpack.c.l.b16 %v316
    %v466 = vunpack.c.h.b16 %v316
    %v467 = vunpack.c.l.b16 %v317
    %v468 = vunpack.c.h.b16 %v317
    %v469 = vunpack.c.l.b16 %v318
    %v470 = vunpack.c.h.b16 %v318
    %v471 = vunpack.c.l.b16 %v319
    %v472 = vunpack.c.h.b16 %v319
    %v473 = vunpack.c.l.b16 %v320
    %v474 = vunpack.c.h.b16 %v320
    %v475 = vunpack.c.l.b16 %v321
    %v476 = vunpack.c.h.b16 %v321
    %v477 = vunpack.c.l.b16 %v322
    %v478 = vunpack.c.h.b16 %v322
    %v479 = vunpack.c.l.b16 %v323
    %v480 = vunpack.c.h.b16 %v323
    %v481 = vunpack.c.l.b16 %v324
    %v482 = vunpack.c.h.b16 %v324
    %v483 = vunpack.c.l.b16 %v325
    %v484 = vunpack.c.h.b16 %v325
    %v485 = vunpack.c.l.b16 %v326
    %v486 = vunpack.c.h.b16 %v326
    %v487 = vunpack.c.l.b16 %v327
    %v488 = vunpack.c.h.b16 %v327
    %v489 = vunpack.c.l.b16 %v328
    %v490 = vunpack.c.h.b16 %v328
    %v491 = vunpack.c.l.b16 %v329
    %v492 = vunpack.c.h.b16 %v329
    %v493 = vunpack.c.l.b16 %v330
    %v494 = vunpack.c.h.b16 %v330
    %v495 = vunpack.c.l.b16 %v331
    %v496 = vunpack.c.h.b16 %v331
    %v497 = vunpack.c.l.b16 %v332
    %v498 = vunpack.c.h.b16 %v332
    %v499 = vunpack.c.l.b16 %v333
    %v500 = vunpack.c.h.b16 %v333
    %v501 = vunpack.c.l.b16 %v334
    %v502 = vunpack.c.h.b16 %v334
    %v503 = vunpack.c.l.b16 %v335
    %v504 = vunpack.c.h.b16 %v335
    %v505 = vunpack.c.l.b16 %v336
    %v506 = vunpack.c.h.b16 %v336
    %v507 = vunpack.c.l.b16 %v337
    %v508 = vunpack.c.h.b16 %v337
    %v509 = vunpack.c.l.b16 %v338
    %v510 = vunpack.c.h.b16 %v338
    %v511 = vunpack.c.l.b16 %v339
    %v512 = vunpack.c.h.b16 %v339
    %v513 = vunpack.c.l.b16 %v340
    %v514 = vunpack.c.h.b16 %v340
    %v515 = vunpack.c.l.b16 %v341
    %v516 = vunpack.c.h.b16 %v341
    %v517 = vunpack.c.l.b16 %v342
    %v518 = vunpack.c.h.b16 %v342
    %v519 = vpack.c.b16 %v429, %v423
    %v520 = vpack.c.b16 %v430, %v424
    %v521 = vpack.c.b16 %v431, %v425
    %v522 = vpack.c.b16 %v432, %v426
    %v523 = vpack.c.b16 %v433, %v427
    %v524 = vpack.c.b16 %v434, %v428
    %v525 = vpack.c.b16 %v441, %v435
    %v526 = vpack.c.b16 %v442, %v436
    %v527 = vpack.c.b16 %v443, %v437
    %v528 = vpack.c.b16 %v444, %v438
    %v529 = vpack.c.b16 %v445, %v439
    %v530 = vpack.c.b16 %v446, %v440
    %v531 = vpack.c.b16 %v453, %v447
    %v532 = vpack.c.b16 %v454, %v448
    %v533 = vpack.c.b16 %v455, %v449
    %v534 = vpack.c.b16 %v456, %v450
    %v535 = vpack.c.b16 %v457, %v451
    %v536 = vpack.c.b16 %v458, %v452
    %v537 = vpack.c.b16 %v465, %v459
    %v538 = vpack.c.b16 %v466, %v460
    %v539 = vpack.c.b16 %v467, %v461
    %v540 = vpack.c.b16 %v468, %v462
    %v541 = vpack.c.b16 %v469, %v463
    %v542 = vpack.c.b16 %v470, %v464
    %v543 = vpack.c.b16 %v477, %v471
    %v544 = vpack.c.b16 %v478, %v472
    %v545 = vpack.c.b16 %v479, %v473
    %v546 = vpack.c.b16 %v480, %v474
    %v547 = vpack.c.b16 %v481, %v475
    %v548 = vpack.c.b16 %v482, %v476
    %v549 = vpack.c.b16 %v489, %v483
    %v550 = vpack.c.b16 %v490, %v484
    %v551 = vpack.c.b16 %v491, %v485
    %v552 = vpack.c.b16 %v492, %v486
    %v553 = vpack.c.b16 %v493, %v487
    %v554 = vpack.c.b16 %v494, %v488
    %v555 = vpack.c.b16 %v501, %v495
    %v556 = vpack.c.b16 %v502, %v496
    %v557 = vpack.c.b16 %v503, %v497
    %v558 = vpack.c.b16 %v504, %v498
    %v559 = vpack.c.b16 %v505, %v499
    %v560 = vpack.c.b16 %v506, %v500
    %v561 = vpack.c.b16 %v513, %v507
    %v562 = vpack.c.b16 %v514, %v508
    %v563 = vpack.c.b16 %v515, %v509
    %v564 = vpack.c.b16 %v516, %v510
    %v565 = vpack.c.b16 %v517, %v511
    %v566 = vpack.c.b16 %v518, %v512
    %615 = vmatprep.subr.bf16.mxu0 %v520
    %616 = vmatpush1.bf16.msra.mxu0 %v519
    %617 = vmatprep.subr.bf16.mxu0 %v526
    %618 = vmatpush1.bf16.msra.mxu0 %v525
    %619 = vmatprep.subr.bf16.mxu0 %v532
    %620 = vmatpush1.bf16.msra.mxu0 %v531
    %621 = vmatprep.subr.bf16.mxu0 %v538
    %622 = vmatpush1.bf16.msra.mxu0 %v537
    %623 = vmatprep.subr.bf16.mxu0 %v544
    %624 = vmatpush1.bf16.msra.mxu0 %v543
    %625 = vmatprep.subr.bf16.mxu0 %v550
    %626 = vmatpush1.bf16.msra.mxu0 %v549
    %627 = vmatprep.subr.bf16.mxu0 %v556
    %628 = vmatpush1.bf16.msra.mxu0 %v555
    %629 = vmatprep.subr.bf16.mxu0 %v562
    %630 = vmatpush1.bf16.msra.mxu0 %v561
    %631 = vmatprep.subr.bf16.mxu0 0
    %632 = vmatpush1.bf16.msra.mxu0 0
    %633 = vmatprep.subr.bf16.mxu0 0
    %634 = vmatpush1.bf16.msra.mxu0 0
    %635 = vmatprep.subr.bf16.mxu0 0
    %636 = vmatpush1.bf16.msra.mxu0 0
    %637 = vmatprep.subr.bf16.mxu0 0
    %638 = vmatpush1.bf16.msra.mxu0 0
    %639 = vmatprep.subr.bf16.mxu0 0
    %640 = vmatpush1.bf16.msra.mxu0 0
    %641 = vmatprep.subr.bf16.mxu0 0
    %642 = vmatpush1.bf16.msra.mxu0 0
    %643 = vmatprep.subr.bf16.mxu0 0
    %644 = vmatpush1.bf16.msra.mxu0 0
    %645 = vmatprep.subr.bf16.mxu0 0
    %646 = vmatpush1.bf16.msra.mxu0 0
    %647 = vmatprep.mubr.bf16.mxu0 0
    %648 = vmatmul.mubr.bf16.gmra.mrb[0].mxu0 %v294
    %v649 = vpop.f32.mrb[0].mxu0
    %v650 = vadd.f32 %v348, %v649
    %v651 = vpop.f32.mrb[0].mxu0
    %v652 = vadd.f32 %v352, %v651
    %v653 = vpop.f32.mrb[0].mxu0
    %v654 = vpop.f32.mrb[0].mxu0
    %655 = vdwg.mxu0
    %656 = vmatprep.subr.bf16.mxu0 %v522
    %657 = vmatpush1.bf16.msra.mxu0 %v521
    %658 = vmatprep.subr.bf16.mxu0 %v528
    %659 = vmatpush1.bf16.msra.mxu0 %v527
    %660 = vmatprep.subr.bf16.mxu0 %v534
    %661 = vmatpush1.bf16.msra.mxu0 %v533
    %662 = vmatprep.subr.bf16.mxu0 %v540
    %663 = vmatpush1.bf16.msra.mxu0 %v539
    %664 = vmatprep.subr.bf16.mxu0 %v546
    %665 = vmatpush1.bf16.msra.mxu0 %v545
    %666 = vmatprep.subr.bf16.mxu0 %v552
    %667 = vmatpush1.bf16.msra.mxu0 %v551
    %668 = vmatprep.subr.bf16.mxu0 %v558
    %669 = vmatpush1.bf16.msra.mxu0 %v557
    %670 = vmatprep.subr.bf16.mxu0 %v564
    %671 = vmatpush1.bf16.msra.mxu0 %v563
    %672 = vmatprep.subr.bf16.mxu0 0
    %673 = vmatpush1.bf16.msra.mxu0 0
    %674 = vmatprep.subr.bf16.mxu0 0
    %675 = vmatpush1.bf16.msra.mxu0 0
    %676 = vmatprep.subr.bf16.mxu0 0
    %677 = vmatpush1.bf16.msra.mxu0 0
    %678 = vmatprep.subr.bf16.mxu0 0
    %679 = vmatpush1.bf16.msra.mxu0 0
    %680 = vmatprep.subr.bf16.mxu0 0
    %681 = vmatpush1.bf16.msra.mxu0 0
    %682 = vmatprep.subr.bf16.mxu0 0
    %683 = vmatpush1.bf16.msra.mxu0 0
    %684 = vmatprep.subr.bf16.mxu0 0
    %685 = vmatpush1.bf16.msra.mxu0 0
    %686 = vmatprep.subr.bf16.mxu0 0
    %687 = vmatpush1.bf16.msra.mxu0 0
    %688 = vmatprep.mubr.bf16.mxu0 0
    %689 = vmatmul.mubr.bf16.gmra.mrb[0].mxu0 %v294
    %v690 = vpop.f32.mrb[0].mxu0
    %v691 = vadd.f32 %v356, %v690
    %v692 = vpop.f32.mrb[0].mxu0
    %v693 = vadd.f32 %v360, %v692
    %v694 = vpop.f32.mrb[0].mxu0
    %v695 = vpop.f32.mrb[0].mxu0
    %696 = vdwg.mxu0
    %697 = vmatprep.subr.bf16.mxu0 %v524
    %698 = vmatpush1.bf16.msra.mxu0 %v523
    %699 = vmatprep.subr.bf16.mxu0 %v530
    %700 = vmatpush1.bf16.msra.mxu0 %v529
    %701 = vmatprep.subr.bf16.mxu0 %v536
    %702 = vmatpush1.bf16.msra.mxu0 %v535
    %703 = vmatprep.subr.bf16.mxu0 %v542
    %704 = vmatpush1.bf16.msra.mxu0 %v541
    %705 = vmatprep.subr.bf16.mxu0 %v548
    %706 = vmatpush1.bf16.msra.mxu0 %v547
    %707 = vmatprep.subr.bf16.mxu0 %v554
    %708 = vmatpush1.bf16.msra.mxu0 %v553
    %709 = vmatprep.subr.bf16.mxu0 %v560
    %710 = vmatpush1.bf16.msra.mxu0 %v559
    %711 = vmatprep.subr.bf16.mxu0 %v566
    %712 = vmatpush1.bf16.msra.mxu0 %v565
    %713 = vmatprep.subr.bf16.mxu0 0
    %714 = vmatpush1.bf16.msra.mxu0 0
    %715 = vmatprep.subr.bf16.mxu0 0
    %716 = vmatpush1.bf16.msra.mxu0 0
    %717 = vmatprep.subr.bf16.mxu0 0
    %718 = vmatpush1.bf16.msra.mxu0 0
    %719 = vmatprep.subr.bf16.mxu0 0
    %720 = vmatpush1.bf16.msra.mxu0 0
    %721 = vmatprep.subr.bf16.mxu0 0
    %722 = vmatpush1.bf16.msra.mxu0 0
    %723 = vmatprep.subr.bf16.mxu0 0
    %724 = vmatpush1.bf16.msra.mxu0 0
    %725 = vmatprep.subr.bf16.mxu0 0
    %726 = vmatpush1.bf16.msra.mxu0 0
    %727 = vmatprep.subr.bf16.mxu0 0
    %728 = vmatpush1.bf16.msra.mxu0 0
    %729 = vmatprep.mubr.bf16.mxu0 0
    %730 = vmatmul.mubr.bf16.gmra.mrb[0].mxu0 %v294
    %v731 = vpop.f32.mrb[0].mxu0
    %v732 = vadd.f32 %v364, %v731
    %v733 = vpop.f32.mrb[0].mxu0
    %v734 = vadd.f32 %v368, %v733
    %v735 = vpop.f32.mrb[0].mxu0
    %v736 = vpop.f32.mrb[0].mxu0
    %737 = vdwg.mxu0
    %v738 = vmul.f32 %v650, 0.5
    %v739 = vmul.f32 %v652, 0.5
    %v740 = vtanh.pop %v738
    %v741 = vtanh.pop %v739
    %v742 = vadd.f32 %v740, 1.0
    %v743 = vadd.f32 %v741, 1.0
    %v744 = vmul.f32 %v742, 0.5
    %v745 = vmul.f32 %v743, 0.5
    %v746 = vmul.f32 %v691, 0.5
    %v747 = vmul.f32 %v693, 0.5
    %v748 = vtanh.pop %v746
    %v749 = vtanh.pop %v747
    %v750 = vadd.f32 %v748, 1.0
    %v751 = vadd.f32 %v749, 1.0
    %v752 = vmul.f32 %v750, 0.5
    %v753 = vmul.f32 %v751, 0.5
    %v754 = vld [vmem:[%s8] sm:$0x3]
    %v756 = vlaneseq
    %v757 = vshrl.u32 %v756, 7
    %v758 = vsub.s32 0, %v757
    %v759 = vrot.slane %v754, %v758
    %v760 = vlaneseq
    %v761 = vshrl.u32 %v760, 7
    %v762 = vsub.s32 1, %v761
    %v763 = vrot.slane %v754, %v762
    %v766 = vmul.f32 %v744, %v759
    %v767 = vmul.f32 %v745, %v763
    %v768 = vadd.f32 %v732, %v766
    %v769 = vadd.f32 %v734, %v767
    %v770 = vtanh.pop %v768
    %v771 = vtanh.pop %v769
    %v772 = vsub.f32 1.0, %v752
    %v773 = vsub.f32 1.0, %v753
    %v774 = vmul.f32 %v772, %v770
    %v775 = vmul.f32 %v773, %v771
    %v776 = vpack.c.bf16 %v210, %v210
    %v777 = vld [vmem:[#allocation10] sm:$0xf]
    %v778 = vld [vmem:[#allocation10 + $0x4] sm:$0xf]
    %v779 = vld [vmem:[#allocation10 + $0x8] sm:$0xf]
    %v780 = vld [vmem:[#allocation10 + $0xc] sm:$0xf]
    %v781 = vld [vmem:[#allocation10 + $0x10] sm:$0xf]
    %v782 = vld [vmem:[#allocation10 + $0x14] sm:$0xf]
    %v783 = vld [vmem:[#allocation10 + $0x18] sm:$0xf]
    %v784 = vld [vmem:[#allocation10 + $0x1c] sm:$0xf]
    %v785 = vld [vmem:[#allocation10 + $0x20] sm:$0xf]
    %v786 = vld [vmem:[#allocation10 + $0x24] sm:$0xf]
    %v787 = vld [vmem:[#allocation10 + $0x28] sm:$0xf]
    %v788 = vld [vmem:[#allocation10 + $0x2c] sm:$0xf]
    %v789 = vld [vmem:[#allocation10 + $0x30] sm:$0xf]
    %v790 = vld [vmem:[#allocation10 + $0x34] sm:$0xf]
    %v791 = vld [vmem:[#allocation10 + $0x38] sm:$0xf]
    %v792 = vld [vmem:[#allocation10 + $0x3c] sm:$0xf]
    %v793 = vpack.c.bf16 %v774, %v774
    %v794 = vpack.c.bf16 %v775, %v775
    %v795 = vld [vmem:[#allocation11] sm:$0xf]
    %v796 = vld [vmem:[#allocation11 + $0x4] sm:$0xf]
    %v797 = vld [vmem:[#allocation11 + $0x8] sm:$0xf]
    %v798 = vld [vmem:[#allocation11 + $0xc] sm:$0xf]
    %v799 = vld [vmem:[#allocation11 + $0x10] sm:$0xf]
    %v800 = vld [vmem:[#allocation11 + $0x14] sm:$0xf]
    %v801 = vld [vmem:[#allocation11 + $0x18] sm:$0xf]
    %v802 = vld [vmem:[#allocation11 + $0x1c] sm:$0xf]
    %v803 = vld [vmem:[#allocation11 + $0x20] sm:$0xf]
    %v804 = vld [vmem:[#allocation11 + $0x24] sm:$0xf]
    %v805 = vld [vmem:[#allocation11 + $0x28] sm:$0xf]
    %v806 = vld [vmem:[#allocation11 + $0x2c] sm:$0xf]
    %v807 = vld [vmem:[#allocation11 + $0x30] sm:$0xf]
    %v808 = vld [vmem:[#allocation11 + $0x34] sm:$0xf]
    %v809 = vld [vmem:[#allocation11 + $0x38] sm:$0xf]
    %v810 = vld [vmem:[#allocation11 + $0x3c] sm:$0xf]
    %v811 = vld [vmem:[#allocation11 + $0x40] sm:$0xf]
    %v812 = vld [vmem:[#allocation11 + $0x44] sm:$0xf]
    %v813 = vld [vmem:[#allocation11 + $0x48] sm:$0xf]
    %v814 = vld [vmem:[#allocation11 + $0x4c] sm:$0xf]
    %v815 = vld [vmem:[#allocation11 + $0x50] sm:$0xf]
    %v816 = vld [vmem:[#allocation11 + $0x54] sm:$0xf]
    %v817 = vld [vmem:[#allocation11 + $0x58] sm:$0xf]
    %v818 = vld [vmem:[#allocation11 + $0x5c] sm:$0xf]
    %v819 = vld [vmem:[#allocation11 + $0x60] sm:$0xf]
    %v820 = vld [vmem:[#allocation11 + $0x64] sm:$0xf]
    %v821 = vld [vmem:[#allocation11 + $0x68] sm:$0xf]
    %v822 = vld [vmem:[#allocation11 + $0x6c] sm:$0xf]
    %v823 = vld [vmem:[#allocation11 + $0x70] sm:$0xf]
    %v824 = vld [vmem:[#allocation11 + $0x74] sm:$0xf]
    %v825 = vld [vmem:[#allocation11 + $0x78] sm:$0xf]
    %v826 = vld [vmem:[#allocation11 + $0x7c] sm:$0xf]
    %v859 = vunpack.c.l.b16 %v795
    %v860 = vunpack.c.l.b16 %v796
    %v861 = vunpack.c.l.b16 %v797
    %v862 = vunpack.c.l.b16 %v798
    %v863 = vunpack.c.l.b16 %v799
    %v864 = vunpack.c.l.b16 %v800
    %v865 = vunpack.c.l.b16 %v801
    %v866 = vunpack.c.l.b16 %v802
    %v867 = vunpack.c.l.b16 %v803
    %v868 = vunpack.c.l.b16 %v804
    %v869 = vunpack.c.l.b16 %v805
    %v870 = vunpack.c.l.b16 %v806
    %v871 = vunpack.c.l.b16 %v807
    %v872 = vunpack.c.l.b16 %v808
    %v873 = vunpack.c.l.b16 %v809
    %v874 = vunpack.c.l.b16 %v810
    %v875 = vunpack.c.l.b16 %v811
    %v876 = vunpack.c.l.b16 %v812
    %v877 = vunpack.c.l.b16 %v813
    %v878 = vunpack.c.l.b16 %v814
    %v879 = vunpack.c.l.b16 %v815
    %v880 = vunpack.c.l.b16 %v816
    %v881 = vunpack.c.l.b16 %v817
    %v882 = vunpack.c.l.b16 %v818
    %v883 = vunpack.c.l.b16 %v819
    %v884 = vunpack.c.l.b16 %v820
    %v885 = vunpack.c.l.b16 %v821
    %v886 = vunpack.c.l.b16 %v822
    %v887 = vunpack.c.l.b16 %v823
    %v888 = vunpack.c.l.b16 %v824
    %v889 = vunpack.c.l.b16 %v825
    %v890 = vunpack.c.l.b16 %v826
    %v891 = vpack.c.b16 %v860, %v859
    %v892 = vpack.c.b16 %v862, %v861
    %v893 = vpack.c.b16 %v864, %v863
    %v894 = vpack.c.b16 %v866, %v865
    %v895 = vpack.c.b16 %v868, %v867
    %v896 = vpack.c.b16 %v870, %v869
    %v897 = vpack.c.b16 %v872, %v871
    %v898 = vpack.c.b16 %v874, %v873
    %v899 = vpack.c.b16 %v876, %v875
    %v900 = vpack.c.b16 %v878, %v877
    %v901 = vpack.c.b16 %v880, %v879
    %v902 = vpack.c.b16 %v882, %v881
    %v903 = vpack.c.b16 %v884, %v883
    %v904 = vpack.c.b16 %v886, %v885
    %v905 = vpack.c.b16 %v888, %v887
    %v906 = vpack.c.b16 %v890, %v889
    %923 = vmatprep.subr.bf16.mxu0 0
    %924 = vmatpush1.bf16.msra.mxu0 %v891
    %925 = vmatprep.subr.bf16.mxu0 0
    %926 = vmatpush1.bf16.msra.mxu0 %v892
    %927 = vmatprep.subr.bf16.mxu0 0
    %928 = vmatpush1.bf16.msra.mxu0 %v893
    %929 = vmatprep.subr.bf16.mxu0 0
    %930 = vmatpush1.bf16.msra.mxu0 %v894
    %931 = vmatprep.subr.bf16.mxu0 0
    %932 = vmatpush1.bf16.msra.mxu0 %v895
    %933 = vmatprep.subr.bf16.mxu0 0
    %934 = vmatpush1.bf16.msra.mxu0 %v896
    %935 = vmatprep.subr.bf16.mxu0 0
    %936 = vmatpush1.bf16.msra.mxu0 %v897
    %937 = vmatprep.subr.bf16.mxu0 0
    %938 = vmatpush1.bf16.msra.mxu0 %v898
    %939 = vmatprep.subr.bf16.mxu0 0
    %940 = vmatpush1.bf16.msra.mxu0 %v899
    %941 = vmatprep.subr.bf16.mxu0 0
    %942 = vmatpush1.bf16.msra.mxu0 %v900
    %943 = vmatprep.subr.bf16.mxu0 0
    %944 = vmatpush1.bf16.msra.mxu0 %v901
    %945 = vmatprep.subr.bf16.mxu0 0
    %946 = vmatpush1.bf16.msra.mxu0 %v902
    %947 = vmatprep.subr.bf16.mxu0 0
    %948 = vmatpush1.bf16.msra.mxu0 %v903
    %949 = vmatprep.subr.bf16.mxu0 0
    %950 = vmatpush1.bf16.msra.mxu0 %v904
    %951 = vmatprep.subr.bf16.mxu0 0
    %952 = vmatpush1.bf16.msra.mxu0 %v905
    %953 = vmatprep.subr.bf16.mxu0 0
    %954 = vmatpush1.bf16.msra.mxu0 %v906
    %955 = vmatprep.mubr.bf16.mxu0 %v794
    %956 = vmatmul.mubr.bf16.gmra.mrb[0].mxu0 %v793
    %v957 = vpop.f32.mrb[0].mxu0
    %v958 = vadd.f32 0.0, %v957
    %v959 = vpop.f32.mrb[0].mxu0
    %v960 = vpop.f32.mrb[0].mxu0
    %v961 = vpop.f32.mrb[0].mxu0
    %962 = vdwg.mxu0
    %v979 = vunpack.c.l.b16 %v777
    %v980 = vunpack.c.l.b16 %v778
    %v981 = vunpack.c.l.b16 %v779
    %v982 = vunpack.c.l.b16 %v780
    %v983 = vunpack.c.l.b16 %v781
    %v984 = vunpack.c.l.b16 %v782
    %v985 = vunpack.c.l.b16 %v783
    %v986 = vunpack.c.l.b16 %v784
    %v987 = vunpack.c.l.b16 %v785
    %v988 = vunpack.c.l.b16 %v786
    %v989 = vunpack.c.l.b16 %v787
    %v990 = vunpack.c.l.b16 %v788
    %v991 = vunpack.c.l.b16 %v789
    %v992 = vunpack.c.l.b16 %v790
    %v993 = vunpack.c.l.b16 %v791
    %v994 = vunpack.c.l.b16 %v792
    %v995 = vpack.c.b16 %v980, %v979
    %v996 = vpack.c.b16 %v982, %v981
    %v997 = vpack.c.b16 %v984, %v983
    %v998 = vpack.c.b16 %v986, %v985
    %v999 = vpack.c.b16 %v988, %v987
    %v1000 = vpack.c.b16 %v990, %v989
    %v1001 = vpack.c.b16 %v992, %v991
    %v1002 = vpack.c.b16 %v994, %v993
    %1011 = vmatprep.subr.bf16.mxu0 0
    %1012 = vmatpush1.bf16.msra.mxu0 %v995
    %1013 = vmatprep.subr.bf16.mxu0 0
    %1014 = vmatpush1.bf16.msra.mxu0 %v996
    %1015 = vmatprep.subr.bf16.mxu0 0
    %1016 = vmatpush1.bf16.msra.mxu0 %v997
    %1017 = vmatprep.subr.bf16.mxu0 0
    %1018 = vmatpush1.bf16.msra.mxu0 %v998
    %1019 = vmatprep.subr.bf16.mxu0 0
    %1020 = vmatpush1.bf16.msra.mxu0 %v999
    %1021 = vmatprep.subr.bf16.mxu0 0
    %1022 = vmatpush1.bf16.msra.mxu0 %v1000
    %1023 = vmatprep.subr.bf16.mxu0 0
    %1024 = vmatpush1.bf16.msra.mxu0 %v1001
    %1025 = vmatprep.subr.bf16.mxu0 0
    %1026 = vmatpush1.bf16.msra.mxu0 %v1002
    %1027 = vmatprep.subr.bf16.mxu0 0
    %1028 = vmatpush1.bf16.msra.mxu0 0
    %1029 = vmatprep.subr.bf16.mxu0 0
    %1030 = vmatpush1.bf16.msra.mxu0 0
    %1031 = vmatprep.subr.bf16.mxu0 0
    %1032 = vmatpush1.bf16.msra.mxu0 0
    %1033 = vmatprep.subr.bf16.mxu0 0
    %1034 = vmatpush1.bf16.msra.mxu0 0
    %1035 = vmatprep.subr.bf16.mxu0 0
    %1036 = vmatpush1.bf16.msra.mxu0 0
    %1037 = vmatprep.subr.bf16.mxu0 0
    %1038 = vmatpush1.bf16.msra.mxu0 0
    %1039 = vmatprep.subr.bf16.mxu0 0
    %1040 = vmatpush1.bf16.msra.mxu0 0
    %1041 = vmatprep.subr.bf16.mxu0 0
    %1042 = vmatpush1.bf16.msra.mxu0 0
    %1043 = vmatprep.mubr.bf16.mxu0 0
    %1044 = vmatmul.mubr.bf16.gmra.mrb[0].mxu0 %v776
    %v1045 = vpop.f32.mrb[0].mxu0
    %v1046 = vadd.f32 %v958, %v1045
    %v1047 = vpop.f32.mrb[0].mxu0
    %v1048 = vpop.f32.mrb[0].mxu0
    %v1049 = vpop.f32.mrb[0].mxu0
    %1050 = vdwg.mxu0
    %v1051 = vld [vmem:[%s11] sm:$0x1]
    %v1053 = vlaneseq
    %v1054 = vshrl.u32 %v1053, 7
    %v1055 = vsub.s32 0, %v1054
    %v1056 = vrot.slane %v1051, %v1055
    %v1058 = vadd.f32 %v1046, %v1056
    %vm1059 = vcmask 1041408
    %v1060 = vsel %vm1059, %v1058, -inf
    %1061 = vmax.xlane.f32.xlu0 %v1060
    %v1062 = vpop.xlane.xlu0 %1061
    %v1063 = vsub.f32 %v1058, %v1062
    %v1064 = vmul.f32 %v1063, 1.442695
    %v1065 = vpow.pop %v1064
    %v1066 = vsel %vm1059, %v1065, 0.0
    %1067 = vadd.xlane.f32.xlu0 %v1066
    %v1068 = vpop.xlane.xlu0 %1067
    %v1069 = vrcp.pop %v1068
    %v1070 = vmul.f32 %v1065, %v1069
    %v1071 = vpack.c.bf16 %v1070, %v1070
    %1072 = vst [vmem:[#allocation13] sm:$0x1] %v1071
    // Predicated region
    $region74: #{tpu_custom_call.1} parent=1 // pred_check
      _
    $region75: #{tpu_custom_call.1} parent=1 // pred_check_branch
      %1074 = sbr.rel (0) target = $region77
    $region76: #{tpu_custom_call.1} parent=1 // pred_region
      %s1076 = ssub.s32 16, 16
      %1077 = vsyncadd [#allocation4], %s1076
      %s1079 = sshll.u32 [#allocation13], 4
      %s1080 = int_to_ptr.vmem [resolvable:$true] %s1079
      %1082 = dma.vmem_to_hbm [thread:$0]  %s1080, 16, %s12, [#allocation4]
    $region77: #{tpu_custom_call.1} parent=1 // pred_fallthru
      _
    // Predicated region
    $region78: #{tpu_custom_call.1} parent=1 // pred_check
      _
    $region79: #{tpu_custom_call.1} parent=1 // pred_check_branch
      %1084 = sbr.rel (0) target = $region81
    $region80: #{tpu_custom_call.1} parent=1 // pred_region
      %1085 = dma.done [#allocation4], 16
    $region81: #{tpu_custom_call.1} parent=1 // pred_fallthru
      _
    %1086 = vsyncpa [#allocation3], 1
    %1087 = vsyncpa [#allocation6], 1
    %1088 = vsyncpa [#allocation9], 1
    %1089 = vsyncpa [#allocation12], 1
    %1090 = vsyncpa [#allocation4], 1

</llo_original>
